<compile_context>
chip_gen: v5e
topology: v5e:2x2
jax: 0.10.0
libtpu: 0.0.40
codegen_flags: <defaults>
</compile_context>

<pallas_src>
import functools

import jax
import jax.numpy as jnp
from jax.experimental import pallas as pl
from jax.experimental.pallas import tpu as pltpu


def _layernorm_kernel(x_ref, w_ref, b_ref, o_ref, *, eps):
    # x_ref: (TM, H)   w_ref/b_ref: (1, H)   o_ref: (TM, H)
    h = x_ref.shape[-1]
    inv_h = 1.0 / h

    # Pass 1: mean.  Reduction rides the XLU.
    mean = jnp.sum(x_ref[...].astype(jnp.float32), axis=-1, keepdims=True) * inv_h

    # Pass 2: centered (biased) variance.  Re-read x_ref; the centered copy is
    # only live inside this statement, keeping the f32 working set small.
    xc = x_ref[...].astype(jnp.float32) - mean
    var = jnp.sum(xc * xc, axis=-1, keepdims=True) * inv_h
    inv = jax.lax.rsqrt(var + eps)  # EUP, off the VALU path

    # Fold normalization + affine into one FMA per element:
    #   y = x * (inv * w) + (b - mean * inv * w)
    scale = inv * w_ref[...].astype(jnp.float32)
    shift = b_ref[...].astype(jnp.float32) - mean * scale

    # Pass 3: re-read x_ref and apply the fused scale/shift.
    o_ref[...] = (x_ref[...].astype(jnp.float32) * scale + shift).astype(o_ref.dtype)


def _vmem_limit_bytes():
    """Conservative scoped-VMEM limit that works on v5e / v6e / v7x."""
    try:
        cap = pltpu.get_tpu_info().vmem_capacity_bytes
    except Exception:
        cap = 64 * 1024 * 1024  # v7x per-TC physical (smallest generation)
    # Use at most ~3/4 of physical VMEM, never more than 96 MiB.
    return int(min(cap * 3 // 4, 96 * 1024 * 1024))


def _choose_row_tile(rows, hidden, itemsize, vmem_limit):
    """Pick the row-tile size tm from the VMEM budget."""
    # bf16 (and narrower) packs 16 rows per sublane group; f32 packs 8.
    align = 16 if itemsize < 4 else 8

    # Per grid step: double-buffered input + output blocks (2 * 2 * tm*H*bytes)
    # plus ~3 transient f32 working copies of the tile inside the kernel body.
    bytes_per_row = 2 * 2 * hidden * itemsize + 3 * hidden * 4
    tile_budget = int(vmem_limit * 0.6)  # headroom for params / overheads
    tm = tile_budget // max(1, bytes_per_row)
    # Roofline is essentially flat past ~512 rows; capping here keeps VMEM
    # headroom on v7x (64 MiB physical) at large hidden sizes.
    tm = min(tm, 512)
    tm = max(align, (tm // align) * align)

    # Pipelining / megacore: aim for >= 4 grid steps when the input is large
    # enough that this does not shrink tiles out of the roofline-efficient
    # regime (>= 512 rows).  Small inputs keep the largest possible tile
    # (matters most on single-TC, lower-BW v5e).
    if rows >= 4 * 512:
        target = max(512, ((rows // 4) // align) * align)
        tm = min(tm, target)

    # Never larger than the row count rounded up to alignment.
    tm = min(tm, max(align, pl.cdiv(rows, align) * align))

    # Prefer an even number of grid steps (balances v7x's two TensorCores)
    # when it costs little tile size.
    num = pl.cdiv(rows, tm)
    if num > 1 and num % 2 == 1:
        tm_even = pl.cdiv(pl.cdiv(rows, num + 1), align) * align
        if tm_even >= min(tm, 256) and pl.cdiv(rows, tm_even) % 2 == 0:
            tm = tm_even
    return tm


def mixed_fused_layer_norm(x, weight, bias, eps=1e-5, apply_layernorm_1p=False):
    """LayerNorm over the last axis of `x` (matches MixedFusedLayerNorm.forward)."""
    if apply_layernorm_1p:
        weight = weight + 1.0  # matches `weight = self.weight + 1`

    orig_shape = x.shape
    hidden = orig_shape[-1]
    rows = 1
    for d in orig_shape[:-1]:
        rows *= d

    x2 = x.reshape(rows, hidden)
    w2 = weight.reshape(1, hidden)
    b2 = bias.reshape(1, hidden)

    vmem_limit = _vmem_limit_bytes()
    tm = _choose_row_tile(rows, hidden, x2.dtype.itemsize, vmem_limit)
    num_tiles = pl.cdiv(rows, tm)

    # No padding / slicing: a partial last block is handled by Pallas masking.
    # OOB rows may compute garbage but each row is independent and OOB writes
    # are masked, so valid rows are unaffected.
    # NOTE: for hidden < 128 the output stores are lane-masked (vst.msk); this
    # kernel targets typical LLM hidden sizes (multiples of 128).
    kernel = functools.partial(_layernorm_kernel, eps=eps)

    out = pl.pallas_call(
        kernel,
        out_shape=jax.ShapeDtypeStruct((rows, hidden), x.dtype),
        grid_spec=pltpu.PrefetchScalarGridSpec(
            num_scalar_prefetch=0,
            grid=(num_tiles,),
            in_specs=[
                pl.BlockSpec((tm, hidden), lambda i: (i, 0)),
                pl.BlockSpec((1, hidden), lambda i: (0, 0)),
                pl.BlockSpec((1, hidden), lambda i: (0, 0)),
            ],
            out_specs=pl.BlockSpec((tm, hidden), lambda i: (i, 0)),
        ),
        compiler_params=pltpu.CompilerParams(
            dimension_semantics=("parallel",),
            vmem_limit_bytes=vmem_limit,
        ),
    )(x2, w2, b2)

    return out.reshape(orig_shape)


def _reference(x, weight, bias, eps):
    mean = jnp.mean(x.astype(jnp.float32), axis=-1, keepdims=True)
    var = jnp.mean((x.astype(jnp.float32) - mean) ** 2, axis=-1, keepdims=True)
    y = (x.astype(jnp.float32) - mean) * jax.lax.rsqrt(var + eps) * weight + bias
    return y.astype(x.dtype)


if __name__ == "__main__":
    # Small, forward-consistent shapes: batch=2, seq=8, hidden=32.
    batch, seq, hidden = 2, 8, 32
    key = jax.random.PRNGKey(0)
    x = jax.random.normal(key, (batch, seq, hidden), dtype=jnp.float32)

    # Deterministic parameter init matching reset_parameters()
    # (apply_layernorm_1p=False -> weight=ones, bias=zeros; train_bias=False
    #  keeps bias as a zero buffer).
    weight = jnp.ones((hidden,), dtype=jnp.float32)
    bias = jnp.zeros((hidden,), dtype=jnp.float32)

    y = mixed_fused_layer_norm(x, weight, bias, eps=1e-5)
    y = jax.block_until_ready(y)

    ref = _reference(x, weight, bias, 1e-5)
    assert jnp.allclose(y, ref, atol=1e-5, rtol=1e-5), "mismatch vs reference"

    # Secondary check: rows not a multiple of the tile / 8 exercises the
    # unpadded partial-last-block (masked write) path.
    key2 = jax.random.PRNGKey(0)
    x2 = jax.random.normal(key2, (3, 5, 128), dtype=jnp.float32)
    w2 = jnp.ones((128,), dtype=jnp.float32)
    b2 = jnp.zeros((128,), dtype=jnp.float32)
    y2 = jax.block_until_ready(mixed_fused_layer_norm(x2, w2, b2, eps=1e-5))
    ref2 = _reference(x2, w2, b2, 1e-5)
    assert jnp.allclose(y2, ref2, atol=1e-5, rtol=1e-5), "mismatch (ragged rows)"

    print("KERNEL_OK")
</pallas_src>

<mosaic_0001>
module attributes {stable_mosaic.version = 11 : i64} {
  func.func @_layernorm_kernel(%arg0: i32, %arg1: memref<16x32xf32, #tpu.memory_space<vmem>>, %arg2: memref<1x32xf32, #tpu.memory_space<vmem>>, %arg3: memref<1x32xf32, #tpu.memory_space<vmem>>, %arg4: memref<16x32xf32, #tpu.memory_space<vmem>>) attributes {dimension_semantics = [#tpu.dimension_semantics<parallel>], iteration_bounds = array<i64: 1>, scalar_prefetch = 0 : i64, scratch_operands = 0 : i64, tpu.core_type = #tpu.core_type<tc>, window_params = [{transform_indices = @transform_0, window_bounds = array<i64: 16, 32>}, {pipeline_mode = #tpu.pipeline_mode<synchronous>, transform_indices = @transform_1, window_bounds = array<i64: 1, 32>}, {pipeline_mode = #tpu.pipeline_mode<synchronous>, transform_indices = @transform_2, window_bounds = array<i64: 1, 32>}, {transform_indices = @transform_3, window_bounds = array<i64: 16, 32>}]} {
    %c0 = arith.constant 0 : index
    %c0_0 = arith.constant 0 : index
    %0 = vector.load %arg1[%c0, %c0_0] : memref<16x32xf32, #tpu.memory_space<vmem>>, vector<16x32xf32>
    %cst = arith.constant dense<0.000000e+00> : vector<16xf32>
    %1 = vector.multi_reduction <add>, %0, %cst [1] : vector<16x32xf32> to vector<16xf32>
    %2 = vector.shape_cast %1 : vector<16xf32> to vector<16x1xf32>
    %cst_1 = arith.constant 3.125000e-02 : f32
    %3 = vector.broadcast %cst_1 : f32 to vector<16x1xf32>
    %4 = arith.mulf %2, %3 : vector<16x1xf32>
    %c0_2 = arith.constant 0 : index
    %c0_3 = arith.constant 0 : index
    %5 = vector.load %arg1[%c0_2, %c0_3] : memref<16x32xf32, #tpu.memory_space<vmem>>, vector<16x32xf32>
    %6 = vector.broadcast %4 : vector<16x1xf32> to vector<16x32xf32>
    %7 = arith.subf %5, %6 : vector<16x32xf32>
    %8 = arith.mulf %7, %7 : vector<16x32xf32>
    %cst_4 = arith.constant dense<0.000000e+00> : vector<16xf32>
    %9 = vector.multi_reduction <add>, %8, %cst_4 [1] : vector<16x32xf32> to vector<16xf32>
    %10 = vector.shape_cast %9 : vector<16xf32> to vector<16x1xf32>
    %cst_5 = arith.constant 3.125000e-02 : f32
    %11 = vector.broadcast %cst_5 : f32 to vector<16x1xf32>
    %12 = arith.mulf %10, %11 : vector<16x1xf32>
    %cst_6 = arith.constant 9.99999974E-6 : f32
    %13 = vector.broadcast %cst_6 : f32 to vector<16x1xf32>
    %14 = arith.addf %12, %13 : vector<16x1xf32>
    %15 = math.rsqrt %14 : vector<16x1xf32>
    %c0_7 = arith.constant 0 : index
    %c0_8 = arith.constant 0 : index
    %16 = vector.load %arg2[%c0_7, %c0_8] : memref<1x32xf32, #tpu.memory_space<vmem>>, vector<1x32xf32>
    %17 = vector.broadcast %15 : vector<16x1xf32> to vector<16x32xf32>
    %18 = vector.broadcast %16 : vector<1x32xf32> to vector<16x32xf32>
    %19 = arith.mulf %17, %18 : vector<16x32xf32>
    %c0_9 = arith.constant 0 : index
    %c0_10 = arith.constant 0 : index
    %20 = vector.load %arg3[%c0_9, %c0_10] : memref<1x32xf32, #tpu.memory_space<vmem>>, vector<1x32xf32>
    %21 = vector.broadcast %4 : vector<16x1xf32> to vector<16x32xf32>
    %22 = arith.mulf %21, %19 : vector<16x32xf32>
    %23 = vector.broadcast %20 : vector<1x32xf32> to vector<16x32xf32>
    %24 = arith.subf %23, %22 : vector<16x32xf32>
    %c0_11 = arith.constant 0 : index
    %c0_12 = arith.constant 0 : index
    %25 = vector.load %arg1[%c0_11, %c0_12] : memref<16x32xf32, #tpu.memory_space<vmem>>, vector<16x32xf32>
    %26 = arith.mulf %25, %19 : vector<16x32xf32>
    %27 = arith.addf %26, %24 : vector<16x32xf32>
    %c0_13 = arith.constant 0 : index
    %c0_14 = arith.constant 0 : index
    %28 = vector.load %arg4[%c0_13, %c0_14] : memref<16x32xf32, #tpu.memory_space<vmem>>, vector<16x32xf32>
    tpu.vector_store %arg4[%c0_13, %c0_14], %27 {strides = array<i32>} : memref<16x32xf32, #tpu.memory_space<vmem>>, vector<16x32xf32>,
    return
  }
  func.func @transform_0(%arg0: i32) -> (i32, i32) {
    %c0_i32 = arith.constant 0 : i32
    %c0_i32_0 = arith.constant 0 : i32
    return %arg0, %c0_i32 : i32, i32
  }
  func.func @transform_1(%arg0: i32) -> (i32, i32) {
    %c0_i32 = arith.constant 0 : i32
    %c0_i32_0 = arith.constant 0 : i32
    %c0_i32_1 = arith.constant 0 : i32
    return %c0_i32, %c0_i32_0 : i32, i32
  }
  func.func @transform_2(%arg0: i32) -> (i32, i32) {
    %c0_i32 = arith.constant 0 : i32
    %c0_i32_0 = arith.constant 0 : i32
    %c0_i32_1 = arith.constant 0 : i32
    return %c0_i32, %c0_i32_0 : i32, i32
  }
  func.func @transform_3(%arg0: i32) -> (i32, i32) {
    %c0_i32 = arith.constant 0 : i32
    %c0_i32_0 = arith.constant 0 : i32
    return %arg0, %c0_i32 : i32, i32
  }
}

</mosaic_0001>

<llo_original>
// kernel: tpu_custom_call.1
$region0: #{tpu_custom_call.1}
  #allocation0 [shape = 'u32[]', space=smem, size = 0x4, offset = 0x4, fixed_abs, tag = 'smem constant byte address 0x4 - core index']
  #allocation1 [shape = 'u32[72,128]{1,0:T(1,128)}', space=vmem, size = 0x9000, scoped, tag = 'internal scratch']
  %s0 = inlined_call_operand.hbm [shape: f32[16,32], index: 0, kind: input, shape index: {}]
  %s1 = inlined_call_operand.hbm [shape: f32[1,32], index: 1, kind: input, shape index: {}]
  %s2 = inlined_call_operand.vmem [shape: f32[1,32], index: 2, kind: input, shape index: {}]
  %s3 = inlined_call_operand.hbm [shape: f32[16,32], index: 3, kind: output, shape index: {}]
  %s4 = sld [smem:[#allocation0]]
  $region30: #{tpu_custom_call.1} parent=0
    _
  %s6 = ssub.s32 1, %s4
  %s7 = scalar_select 0, %s6, %s4
  $region1: #{tpu_custom_call.1} parent=0
    #allocation2 [shape = 'u8[8192]{0}', space=vmem, size = 0x2000, scoped, tag = 'input window, operand 0, single buffered']
    #allocation3 [shape = 's32[1]{0}', space=sflag, size = 0x4, scoped, tag = 'scoped memory for tpu_custom_call.1']
    #allocation4 [shape = 's32[1]{0}', space=sflag, size = 0x4, scoped, tag = 'scoped memory for tpu_custom_call.1']
    #allocation5 [shape = 'u8[512]{0}', space=vmem, size = 0x400, scoped, tag = 'input window, operand 1, single buffered']
    #allocation6 [shape = 's32[1]{0}', space=sflag, size = 0x4, scoped, tag = 'scoped memory for tpu_custom_call.1']
    #allocation7 [shape = 'u8[8192]{0}', space=vmem, size = 0x2000, scoped, tag = 'output window, operand 0, single buffered']
    %8 = vsyncpa [#allocation3], 0
    %9 = vsyncpa [#allocation6], 0
    %10 = vsyncpa [#allocation4], 0
    // Predicated region
    $region2: #{tpu_custom_call.1} parent=1 // pred_check
      _
    $region3: #{tpu_custom_call.1} parent=1 // pred_check_branch
      %12 = sbr.rel (0) target = $region5
    $region4: #{tpu_custom_call.1} parent=1 // pred_region
      %14 = vsyncadd [#allocation3], 0
      %s15 = sshll.u32 %s0, 4
      %s16 = int_to_ptr.hbm [resolvable:$true] %s15
      %s17 = sshll.u32 [#allocation2], 4
      %s18 = int_to_ptr.vmem [resolvable:$true] %s17
      %23 = dma.hbm_to_vmem [thread:$0]  %s16, 256, %s18, [#allocation3], 128, 128, 8
    $region5: #{tpu_custom_call.1} parent=1 // pred_fallthru
      _
    // Predicated region
    $region6: #{tpu_custom_call.1} parent=1 // pred_check
      _
    $region7: #{tpu_custom_call.1} parent=1 // pred_check_branch
      %25 = sbr.rel (0) target = $region9
    $region8: #{tpu_custom_call.1} parent=1 // pred_region
      %27 = vsyncadd [#allocation6], 0
      %s29 = sshll.u32 %s1, 4
      %s30 = int_to_ptr.hbm [resolvable:$true] %s29
      %s31 = sshll.u32 [#allocation5], 4
      %s32 = int_to_ptr.vmem [resolvable:$true] %s31
      %34 = dma.hbm_to_vmem [thread:$0]  %s30, 16, %s32, [#allocation6]
    $region9: #{tpu_custom_call.1} parent=1 // pred_fallthru
      _
    // Predicated region
    $region10: #{tpu_custom_call.1} parent=1 // pred_check
      _
    $region11: #{tpu_custom_call.1} parent=1 // pred_check_branch
      %36 = sbr.rel (0) target = $region13
    $region12: #{tpu_custom_call.1} parent=1 // pred_region
      _
    $region13: #{tpu_custom_call.1} parent=1 // pred_fallthru
      _
    // Predicated region
    $region14: #{tpu_custom_call.1} parent=1 // pred_check
      _
    $region15: #{tpu_custom_call.1} parent=1 // pred_check_branch
      %38 = sbr.rel (0) target = $region17
    $region16: #{tpu_custom_call.1} parent=1 // pred_region
      %40 = dma.done [#allocation3], 256
    $region17: #{tpu_custom_call.1} parent=1 // pred_fallthru
      _
    // Predicated region
    $region18: #{tpu_custom_call.1} parent=1 // pred_check
      _
    $region19: #{tpu_custom_call.1} parent=1 // pred_check_branch
      %42 = sbr.rel (0) target = $region21
    $region20: #{tpu_custom_call.1} parent=1 // pred_region
      %44 = dma.done [#allocation6], 16
    $region21: #{tpu_custom_call.1} parent=1 // pred_fallthru
      _
    %v45 = vld [vmem:[#allocation2] sm:$0xff]
    %v46 = vld [vmem:[#allocation2 + $0x8] sm:$0xff]
    %vm47 = vcmask 261120
    %v48 = vsel %vm47, %v45, 0.0
    %49 = vadd.xlane.f32.xlu0 %v48
    %v50 = vpop.xlane.xlu0 %49
    %v51 = vsel %vm47, %v46, 0.0
    %52 = vadd.xlane.f32.xlu0 %v51
    %v53 = vpop.xlane.xlu0 %52
    %v54 = vmul.f32 %v50, 0.03125
    %v55 = vmul.f32 %v53, 0.03125
    %v56 = vsub.f32 %v45, %v54
    %v57 = vsub.f32 %v46, %v55
    %v58 = vmul.f32 %v56, %v56
    %v59 = vmul.f32 %v57, %v57
    %v60 = vsel %vm47, %v58, 0.0
    %61 = vadd.xlane.f32.xlu0 %v60
    %v62 = vpop.xlane.xlu0 %61
    %v63 = vsel %vm47, %v59, 0.0
    %64 = vadd.xlane.f32.xlu0 %v63
    %v65 = vpop.xlane.xlu0 %64
    %v66 = vmul.f32 %v62, 0.03125
    %v67 = vmul.f32 %v65, 0.03125
    %v68 = vadd.f32 %v66, 1e-05
    %v69 = vadd.f32 %v67, 1e-05
    %v70 = vrsqrt.pop %v68
    %v71 = vmul.f32 %v70, %v68
    %v72 = vmul.f32 %v71, %v70
    %v73 = vmul.f32 0.5, %v72
    %v74 = vsub.f32 1.5, %v73
    %v75 = vmul.f32 %v70, %v74
    %vm76 = vweird.f32 %v68
    %vm77 = vweird.f32 %v70
    %vm78 = vmor %vm76, %vm77
    %v79 = vsel %vm78, %v70, %v75
    %v80 = vrsqrt.pop %v69
    %v81 = vmul.f32 %v80, %v69
    %v82 = vmul.f32 %v81, %v80
    %v83 = vmul.f32 0.5, %v82
    %v84 = vsub.f32 1.5, %v83
    %v85 = vmul.f32 %v80, %v84
    %vm86 = vweird.f32 %v69
    %vm87 = vweird.f32 %v80
    %vm88 = vmor %vm86, %vm87
    %v89 = vsel %vm88, %v80, %v85
    %v90 = vld [vmem:[#allocation5] sm:$0x1]
    %v92 = vperm.slane %v90, 0
    %v94 = vmul.f32 %v79, %v92
    %v95 = vmul.f32 %v89, %v92
    %v96 = vld [vmem:[%s2] sm:$0x1]
    %v97 = vmul.f32 %v54, %v94
    %v98 = vmul.f32 %v55, %v95
    %v100 = vperm.slane %v96, 0
    %v102 = vsub.f32 %v100, %v97
    %v103 = vsub.f32 %v100, %v98
    %v104 = vmul.f32 %v45, %v94
    %v105 = vmul.f32 %v46, %v95
    %v106 = vadd.f32 %v104, %v102
    %v107 = vadd.f32 %v105, %v103
    %108 = vst.msk [vmem:[#allocation7] sm:$0xff] %vm47, %v106
    %109 = vst.msk [vmem:[#allocation7 + $0x8] sm:$0xff] %vm47, %v107
    // Predicated region
    $region22: #{tpu_custom_call.1} parent=1 // pred_check
      _
    $region23: #{tpu_custom_call.1} parent=1 // pred_check_branch
      %111 = sbr.rel (0) target = $region25
    $region24: #{tpu_custom_call.1} parent=1 // pred_region
      %113 = vsyncadd [#allocation4], 0
      %s114 = sshll.u32 [#allocation7], 4
      %s115 = int_to_ptr.vmem [resolvable:$true] %s114
      %s116 = sshll.u32 %s3, 4
      %s117 = int_to_ptr.hbm [resolvable:$true] %s116
      %122 = dma.vmem_to_hbm [thread:$0]  %s115, 256, %s117, [#allocation4], 128, 128, 8
    $region25: #{tpu_custom_call.1} parent=1 // pred_fallthru
      _
    // Predicated region
    $region26: #{tpu_custom_call.1} parent=1 // pred_check
      _
    $region27: #{tpu_custom_call.1} parent=1 // pred_check_branch
      %124 = sbr.rel (0) target = $region29
    $region28: #{tpu_custom_call.1} parent=1 // pred_region
      %126 = dma.done [#allocation4], 256
    $region29: #{tpu_custom_call.1} parent=1 // pred_fallthru
      _
    %127 = vsyncpa [#allocation3], 1
    %128 = vsyncpa [#allocation6], 1
    %129 = vsyncpa [#allocation4], 1

</llo_original>
